<compile_context>
chip_gen: v7x
topology: tpu7x:2x2x1
jax: 0.10.0
libtpu: 0.0.40
codegen_flags: <defaults>
</compile_context>

<pallas_src>
import functools

import jax
import jax.numpy as jnp
from jax.experimental import pallas as pl
from jax.experimental.pallas import tpu as pltpu

_LANES = 128
_MAX_BLOCK_ROWS = 2048  # 2048 * 128 * 4 B = 1 MiB per pipeline buffer


def _stable_softplus(x):
    # softplus(x) = max(x, 0) + log1p(exp(-|x|))   (numerically stable)
    return jnp.maximum(x, 0.0) + jnp.log1p(jnp.exp(-jnp.abs(x)))


def _bce_expert_loss_kernel(x_ref, o_ref, acc_ref, *, n_pos, n_total,
                            inv_pos, inv_neg):
    step = pl.program_id(0)

    @pl.when(step == 0)
    def _():
        acc_ref[...] = jnp.zeros_like(acc_ref)

    block_rows = x_ref.shape[0]

    # Flat element index of every slot in this tile (static counts; cheap VPU
    # work hidden under the input DMA).
    row_ids = jax.lax.broadcasted_iota(jnp.int32, (block_rows, _LANES), 0)
    lane_ids = jax.lax.broadcasted_iota(jnp.int32, (block_rows, _LANES), 1)
    idx = (step * block_rows + row_ids) * _LANES + lane_ids

    # Weight: 1/n_pos for the (pre-negated) positive logits, 1/n_neg for the
    # negative logits, 0 for the zero padding.  Reciprocals are compile-time
    # constants, so there are no in-kernel divides.
    w = jnp.where(
        idx < n_pos,
        jnp.float32(inv_pos),
        jnp.where(idx < n_total, jnp.float32(inv_neg), jnp.float32(0.0)),
    )

    vals = _stable_softplus(x_ref[...]) * w

    # Sublane-axis partial sum into a lane-wide accumulator (VPU adds only);
    # defer the single cross-lane reduce to the final step.
    acc_ref[...] += jnp.sum(vals, axis=0, keepdims=True)

    @pl.when(step == pl.num_programs(0) - 1)
    def _():
        o_ref[...] = jnp.sum(acc_ref[...], keepdims=True)


@jax.jit
def bce_expert_loss(logits_p1, logits_n):
    # Glue (squeeze / negate / concat / pad) stays in plain JAX (one fused XLA
    # op); the softplus + weighted reduction hot path runs in the kernel.
    logits_pos = jnp.squeeze(logits_p1).reshape(-1).astype(jnp.float32)
    logits_neg = jnp.squeeze(logits_n).reshape(-1).astype(jnp.float32)

    n_pos = int(logits_pos.shape[0])
    n_neg = int(logits_neg.shape[0])
    n_total = n_pos + n_neg

    # Static reciprocals.  (Empty groups would be nan in PyTorch; guard to 0.)
    inv_pos = (1.0 / n_pos) if n_pos > 0 else 0.0
    inv_neg = (1.0 / n_neg) if n_neg > 0 else 0.0

    # Tile the row axis: blocks of up to 2048 rows x 128 lanes so the pipeline
    # (2 buffers per input) comfortably fits VMEM on v5e/v6e/v7x for any N.
    rows_needed = max(1, pl.cdiv(n_total, _LANES))
    block_rows = min(_MAX_BLOCK_ROWS, ((rows_needed + 7) // 8) * 8)
    rows = pl.cdiv(rows_needed, block_rows) * block_rows
    grid = rows // block_rows

    # Single fused slab: negate the positive logits so every element is just
    # softplus(x); zero padding is killed by weight 0 in-kernel.
    x = jnp.concatenate([-logits_pos, logits_neg], axis=0)
    x = jnp.pad(x, (0, rows * _LANES - n_total)).reshape(rows, _LANES)

    kernel = functools.partial(
        _bce_expert_loss_kernel,
        n_pos=n_pos,
        n_total=n_total,
        inv_pos=inv_pos,
        inv_neg=inv_neg,
    )

    out = pl.pallas_call(
        kernel,
        out_shape=jax.ShapeDtypeStruct((1, 1), jnp.float32),
        grid_spec=pltpu.PrefetchScalarGridSpec(
            num_scalar_prefetch=0,
            grid=(grid,),
            in_specs=[pl.BlockSpec((block_rows, _LANES), lambda i: (i, 0))],
            out_specs=pl.BlockSpec((1, 1), lambda i: (0, 0)),
            scratch_shapes=[pltpu.VMEM((1, _LANES), jnp.float32)],
        ),
        compiler_params=pltpu.CompilerParams(
            dimension_semantics=("arbitrary",),
            vmem_limit_bytes=64 << 20,
        ),
    )(x)
    return out[0, 0]


def _reference(logits_p1, logits_n):
    pos = jnp.squeeze(logits_p1).reshape(-1).astype(jnp.float32)
    neg = jnp.squeeze(logits_n).reshape(-1).astype(jnp.float32)
    return jnp.mean(_stable_softplus(-pos)) + jnp.mean(_stable_softplus(neg))


if __name__ == "__main__":
    key = jax.random.PRNGKey(0)
    k1, k2 = jax.random.split(key, 2)
    # Module-consistent shapes: per-node logit columns (N, 1) float32.
    logits_p1 = jax.random.normal(k1, (16, 1), jnp.float32)
    logits_n = jax.random.normal(k2, (16, 1), jnp.float32)

    loss = bce_expert_loss(logits_p1, logits_n)
    loss = jax.block_until_ready(loss)

    ref = _reference(logits_p1, logits_n)
    assert jnp.allclose(loss, ref, rtol=1e-5, atol=1e-5), (loss, ref)
    print("KERNEL_OK")
</pallas_src>

<mosaic_0001>
module attributes {stable_mosaic.version = 11 : i64} {
  func.func @_bce_expert_loss_kernel(%arg0: i32, %arg1: memref<8x128xf32, #tpu.memory_space<vmem>>, %arg2: memref<1x1xf32, #tpu.memory_space<vmem>>, %arg3: memref<1x128xf32, #tpu.memory_space<vmem>>) attributes {dimension_semantics = [#tpu.dimension_semantics<arbitrary>], iteration_bounds = array<i64: 1>, scalar_prefetch = 0 : i64, scratch_operands = 1 : i64, tpu.core_type = #tpu.core_type<tc>, window_params = [{transform_indices = @transform_0, window_bounds = array<i64: 8, 128>}, {pipeline_mode = #tpu.pipeline_mode<synchronous>, transform_indices = @transform_1, window_bounds = array<i64: 1, 1>}]} {
    %c0_i32 = arith.constant 0 : i32
    %0 = arith.cmpi eq, %arg0, %c0_i32 : i32
    %1 = arith.extui %0 : i1 to i32
    %c0_i32_0 = arith.constant 0 : i32
    %2 = arith.cmpi ne, %1, %c0_i32_0 : i32
    scf.if %2 {
      %cst_13 = arith.constant 0.000000e+00 : f32
      %38 = vector.broadcast %cst_13 : f32 to vector<1x128xf32>
      %c0_14 = arith.constant 0 : index
      %c0_15 = arith.constant 0 : index
      %39 = vector.load %arg3[%c0_14, %c0_15] : memref<1x128xf32, #tpu.memory_space<vmem>>, vector<1x128xf32>
      tpu.vector_store %arg3[%c0_14, %c0_15], %38 {strides = array<i32>} : memref<1x128xf32, #tpu.memory_space<vmem>>, vector<1x128xf32>,
    } else {
    }
    %3 = tpu.iota {dimensions = array<i32: 0>} : vector<8x128xi32>
    %4 = tpu.iota {dimensions = array<i32: 1>} : vector<8x128xi32>
    %c8_i32 = arith.constant 8 : i32
    %5 = arith.muli %arg0, %c8_i32 : i32
    %6 = vector.broadcast %5 : i32 to vector<8x128xi32>
    %7 = arith.addi %6, %3 : vector<8x128xi32>
    %c128_i32 = arith.constant 128 : i32
    %8 = vector.broadcast %c128_i32 : i32 to vector<8x128xi32>
    %9 = arith.muli %7, %8 : vector<8x128xi32>
    %10 = arith.addi %9, %4 : vector<8x128xi32>
    %c16_i32 = arith.constant 16 : i32
    %11 = vector.broadcast %c16_i32 : i32 to vector<8x128xi32>
    %12 = arith.cmpi slt, %10, %11 : vector<8x128xi32>
    %c32_i32 = arith.constant 32 : i32
    %13 = vector.broadcast %c32_i32 : i32 to vector<8x128xi32>
    %14 = arith.cmpi slt, %10, %13 : vector<8x128xi32>
    %cst = arith.constant 6.250000e-02 : f32
    %cst_1 = arith.constant 0.000000e+00 : f32
    %15 = vector.broadcast %cst : f32 to vector<8x128xf32>
    %16 = vector.broadcast %cst_1 : f32 to vector<8x128xf32>
    %17 = arith.select %14, %15, %16 : vector<8x128xi1>, vector<8x128xf32>
    %cst_2 = arith.constant 6.250000e-02 : f32
    %18 = vector.broadcast %cst_2 : f32 to vector<8x128xf32>
    %19 = arith.select %12, %18, %17 : vector<8x128xi1>, vector<8x128xf32>
    %c0 = arith.constant 0 : index
    %c0_3 = arith.constant 0 : index
    %20 = vector.load %arg1[%c0, %c0_3] : memref<8x128xf32, #tpu.memory_space<vmem>>, vector<8x128xf32>
    %cst_4 = arith.constant 0.000000e+00 : f32
    %21 = vector.broadcast %cst_4 : f32 to vector<8x128xf32>
    %22 = arith.maximumf %20, %21 : vector<8x128xf32>
    %23 = math.absf %20 : vector<8x128xf32>
    %cst_5 = arith.constant 0.000000e+00 : f32
    %24 = vector.broadcast %cst_5 : f32 to vector<8x128xf32>
    %25 = arith.subf %24, %23 : vector<8x128xf32>
    %26 = math.exp %25 : vector<8x128xf32>
    %27 = math.log1p %26 : vector<8x128xf32>
    %28 = arith.addf %22, %27 : vector<8x128xf32>
    %29 = arith.mulf %28, %19 : vector<8x128xf32>
    %c0_6 = arith.constant 0 : index
    %c0_7 = arith.constant 0 : index
    %30 = vector.load %arg3[%c0_6, %c0_7] : memref<1x128xf32, #tpu.memory_space<vmem>>, vector<1x128xf32>
    %cst_8 = arith.constant dense<0.000000e+00> : vector<128xf32>
    %31 = vector.multi_reduction <add>, %29, %cst_8 [0] : vector<8x128xf32> to vector<128xf32>
    %32 = vector.shape_cast %31 : vector<128xf32> to vector<1x128xf32>
    %33 = arith.addf %30, %32 : vector<1x128xf32>
    %c0_9 = arith.constant 0 : index
    %c0_10 = arith.constant 0 : index
    %34 = vector.load %arg3[%c0_9, %c0_10] : memref<1x128xf32, #tpu.memory_space<vmem>>, vector<1x128xf32>
    tpu.vector_store %arg3[%c0_9, %c0_10], %33 {strides = array<i32>} : memref<1x128xf32, #tpu.memory_space<vmem>>, vector<1x128xf32>,
    %c0_i32_11 = arith.constant 0 : i32
    %35 = arith.cmpi eq, %arg0, %c0_i32_11 : i32
    %36 = arith.extui %35 : i1 to i32
    %c0_i32_12 = arith.constant 0 : i32
    %37 = arith.cmpi ne, %36, %c0_i32_12 : i32
    scf.if %37 {
      %c0_13 = arith.constant 0 : index
      %c0_14 = arith.constant 0 : index
      %38 = vector.load %arg3[%c0_13, %c0_14] : memref<1x128xf32, #tpu.memory_space<vmem>>, vector<1x128xf32>
      %39 = vector.shape_cast %38 : vector<1x128xf32> to vector<1x1x128xf32>
      %cst_15 = arith.constant dense<0.000000e+00> : vector<1xf32>
      %40 = vector.multi_reduction <add>, %39, %cst_15 [1, 2] : vector<1x1x128xf32> to vector<1xf32>
      %41 = vector.shape_cast %40 : vector<1xf32> to vector<1x1x1xf32>
      %42 = vector.extract %41[0, 0, 0] : f32 from vector<1x1x1xf32>
      %43 = vector.broadcast %42 : f32 to vector<1x1xf32>
      %c0_16 = arith.constant 0 : index
      %c0_17 = arith.constant 0 : index
      %44 = vector.load %arg2[%c0_16, %c0_17] : memref<1x1xf32, #tpu.memory_space<vmem>>, vector<1x1xf32>
      tpu.vector_store %arg2[%c0_16, %c0_17], %43 {strides = array<i32>} : memref<1x1xf32, #tpu.memory_space<vmem>>, vector<1x1xf32>,
    } else {
    }
    return
  }
  func.func @transform_0(%arg0: i32) -> (i32, i32) {
    %c0_i32 = arith.constant 0 : i32
    %c0_i32_0 = arith.constant 0 : i32
    return %arg0, %c0_i32 : i32, i32
  }
  func.func @transform_1(%arg0: i32) -> (i32, i32) {
    %c0_i32 = arith.constant 0 : i32
    %c0_i32_0 = arith.constant 0 : i32
    %c0_i32_1 = arith.constant 0 : i32
    return %c0_i32, %c0_i32_0 : i32, i32
  }
}

</mosaic_0001>

<llo_original>
// kernel: bce_expert_loss.1
$region0: #{bce_expert_loss.1}
  #allocation0 [shape = 'u32[]', space=smem, size = 0x4, offset = 0x4, fixed_abs, tag = 'smem constant byte address 0x4 - core index']
  #allocation1 [shape = 'u32[144,128]{1,0:T(1,128)}', space=vmem, size = 0x12000, scoped, tag = 'internal scratch']
  #allocation2 [shape = 'f32[1,128]{1,0:T(1,128)}', space=vmem, size = 0x200, scoped, tag = 'scratch operand']
  %s0 = inlined_call_operand.hbm [shape: f32[8,128], index: 0, kind: input, shape index: {}]
  %s1 = inlined_call_operand.hbm [shape: f32[1,1], index: 1, kind: output, shape index: {}]
  %s2 = sld [smem:[#allocation0]]
  $region26: #{bce_expert_loss.1} parent=0
    _
  %s4 = ssub.s32 1, %s2
  %s5 = scalar_select 0, %s4, %s2
  $region1: #{bce_expert_loss.1} parent=0
    #allocation3 [shape = 'u8[4096]{0}', space=vmem, size = 0x1000, scoped, tag = 'input window, operand 0, single buffered']
    #allocation4 [shape = 's32[1]{0}', space=sflag, size = 0x4, scoped, tag = 'scoped memory for bce_expert_loss.1']
    #allocation5 [shape = 's32[1]{0}', space=sflag, size = 0x4, scoped, tag = 'scoped memory for bce_expert_loss.1']
    #allocation6 [shape = 'u8[512]{0}', space=vmem, size = 0x400, scoped, tag = 'output window, operand 0, single buffered']
    %6 = vsyncpa [#allocation4], 0
    %7 = vsyncpa [#allocation5], 0
    // Predicated region
    $region2: #{bce_expert_loss.1} parent=1 // pred_check
      _
    $region3: #{bce_expert_loss.1} parent=1 // pred_check_branch
      %9 = sbr.rel (0) target = $region5
    $region4: #{bce_expert_loss.1} parent=1 // pred_region
      %s11 = ssub.s32 128, 128
      %12 = vsyncadd [#allocation4], %s11
      %s14 = sshll.u32 [#allocation3], 4
      %s15 = int_to_ptr.vmem [resolvable:$true] %s14
      %17 = dma.hbm_to_vmem [thread:$0]  %s0, 128, %s15, [#allocation4]
    $region5: #{bce_expert_loss.1} parent=1 // pred_fallthru
      _
    // Predicated region
    $region6: #{bce_expert_loss.1} parent=1 // pred_check
      _
    $region7: #{bce_expert_loss.1} parent=1 // pred_check_branch
      %19 = sbr.rel (0) target = $region9
    $region8: #{bce_expert_loss.1} parent=1 // pred_region
      %20 = dma.done [#allocation4], 128
    $region9: #{bce_expert_loss.1} parent=1 // pred_fallthru
      _
    %p21 = scmp.eq.s32.totalorder 0, 0
    // Predicated region
    $region10: #{bce_expert_loss.1} parent=1 // pred_check
      %p22 = pneg %p21
    $region11: #{bce_expert_loss.1} parent=1 // pred_check_branch
      %24 = sbr.rel (%p22) target = $region13
    $region12: #{bce_expert_loss.1} parent=1 // pred_region
      %25 = vst [vmem:[#allocation2] sm:$0x1] 0.0
    $region13: #{bce_expert_loss.1} parent=1 // pred_fallthru
      _
    %v26 = vlaneseq
    %v27 = vshrl.u32 %v26, 7
    %v28 = vlaneseq
    %v29 = vand.u32 %v28, 127
    %s30 = smul.u32 0, 8
    %v31 = vstv %s30
    %v32 = vadd.s32 %v31, %v27
    %v33 = vmul.u32 %v32, 128
    %v34 = vadd.s32 %v33, %v29
    %vm35 = vcmp.lt.s32.totalorder %v34, 16
    %vm36 = vcmp.lt.s32.totalorder %v34, 32
    %v37 = vsel %vm36, 0.0625, 0.0
    %v38 = vsel %vm35, 0.0625, %v37
    %v39 = vld [vmem:[#allocation3] sm:$0xff]
    %v40 = vmax.f32 %v39, 0.0
    %v41 = vand.u32 2147483647, %v39
    %v42 = vsub.f32 0.0, %v41
    %v43 = vmul.f32 %v42, 1.442695
    %v44 = vpow.pop %v43
    %v45 = vadd.f32 %v44, 1.0
    %v46 = vlog2.pop %v45
    %v47 = vmul.f32 %v46, 0.6931472
    %v48 = vmul.f32 -0.5, %v44
    %v49 = vadd.f32 %v48, 1.0
    %v50 = vmul.f32 %v49, %v44
    %v51 = vand.u32 2147483647, %v44
    %vm52 = vcmp.lt.f32.partialorder %v51, 0.0004427343
    %v53 = vsel %vm52, %v50, %v47
    %v54 = vadd.f32 %v40, %v53
    %v55 = vmul.f32 %v54, %v38
    %v56 = vld [vmem:[#allocation2] sm:$0x1]
    %v57 = vrot.slane %v55, 4
    %v58 = vadd.f32 %v55, %v57
    %v59 = vrot.slane %v58, 2
    %v60 = vadd.f32 %v58, %v59
    %v61 = vrot.slane %v60, 1
    %v62 = vadd.f32 %v60, %v61
    %v63 = vadd.f32 %v56, %v62
    %64 = vst [vmem:[#allocation2] sm:$0x1] %v63
    // Predicated region
    $region14: #{bce_expert_loss.1} parent=1 // pred_check
      %p65 = pneg %p21
    $region15: #{bce_expert_loss.1} parent=1 // pred_check_branch
      %67 = sbr.rel (%p65) target = $region17
    $region16: #{bce_expert_loss.1} parent=1 // pred_region
      %v68 = vld [vmem:[#allocation2] sm:$0x1]
      %vm69 = vcmask 1040384
      %v70 = vsel %vm69, %v68, 0.0
      %71 = vadd.xlane.f32.xlu0 %v70
      %v72 = vpop.xlane.xlu0 %71
      %v73 = vrot.slane %v72, 4
      %v74 = vadd.f32 %v72, %v73
      %v75 = vrot.slane %v74, 2
      %v76 = vadd.f32 %v74, %v75
      %v77 = vrot.slane %v76, 1
      %v78 = vadd.f32 %v76, %v77
      %s79 = vtos %v78
      %v80 = vstv %s79
      %vm81 = vcmask 0
      %82 = vst.msk [vmem:[#allocation6] sm:$0x1] %vm81, %v80
    $region17: #{bce_expert_loss.1} parent=1 // pred_fallthru
      _
    // Predicated region
    $region18: #{bce_expert_loss.1} parent=1 // pred_check
      _
    $region19: #{bce_expert_loss.1} parent=1 // pred_check_branch
      %84 = sbr.rel (0) target = $region21
    $region20: #{bce_expert_loss.1} parent=1 // pred_region
      %s86 = ssub.s32 16, 16
      %87 = vsyncadd [#allocation5], %s86
      %s89 = sshll.u32 [#allocation6], 4
      %s90 = int_to_ptr.vmem [resolvable:$true] %s89
      %92 = dma.vmem_to_hbm [thread:$0]  %s90, 16, %s1, [#allocation5]
    $region21: #{bce_expert_loss.1} parent=1 // pred_fallthru
      _
    // Predicated region
    $region22: #{bce_expert_loss.1} parent=1 // pred_check
      _
    $region23: #{bce_expert_loss.1} parent=1 // pred_check_branch
      %94 = sbr.rel (0) target = $region25
    $region24: #{bce_expert_loss.1} parent=1 // pred_region
      %95 = dma.done [#allocation5], 16
    $region25: #{bce_expert_loss.1} parent=1 // pred_fallthru
      _
    %96 = vsyncpa [#allocation4], 1
    %97 = vsyncpa [#allocation5], 1

</llo_original>
